<compile_context>
chip_gen: v5e
topology: v5e:2x2
jax: 0.10.0
libtpu: 0.0.40
codegen_flags: <defaults>
</compile_context>

<pallas_src>
import functools

import jax
import jax.numpy as jnp
from jax.experimental import pallas as pl
from jax.experimental.pallas import tpu as pltpu


def _resnet_block_kernel(x_ref, w1_ref, b1_ref, w2_ref, o_ref, *, alpha):
    # x_ref : (C_in, m_tile)   lane-major pixel tile
    # w1_ref: (hid, C_in), b1_ref: (hid, 1), w2_ref: (C_out, hid)
    x = x_ref[...]
    h = jnp.dot(w1_ref[...], x, preferred_element_type=jnp.float32)
    h = jnp.maximum(h + b1_ref[...].astype(jnp.float32), 0.0)
    y = jnp.dot(w2_ref[...], h.astype(x.dtype), preferred_element_type=jnp.float32)
    o_ref[...] = (alpha * y + x.astype(jnp.float32)).astype(o_ref.dtype)


def _vmem_limit_bytes():
    """Chip-aware scoped-VMEM limit: big on v5e/v6e (128 MiB physical), smaller
    on v7x (64 MiB physical), always leaving >=16 MiB headroom."""
    cap = 128 << 20
    try:
        info = pltpu.get_tpu_info()
        cap = int(getattr(info, "vmem_capacity_bytes", cap)) or cap
    except Exception:
        pass
    return int(max(32 << 20, min(cap - (16 << 20), 112 << 20)))


def _choose_m_tile(M, C_in, C_out, hid, itemsize_x, itemsize_w, vmem_limit,
                   target_block_bytes=2 << 20):
    """Pixel (lane) tile: multiple of 128, sized so the x block is ~2 MiB and the
    whole working set (double-buffered x/out, f32 intermediate h, single-buffered
    weights) fits comfortably inside the VMEM budget."""
    per_pixel = 2 * (C_in + C_out) * itemsize_x + hid * 4  # bytes of VMEM per pixel
    weight_bytes = (hid * C_in + C_out * hid + hid) * itemsize_w
    budget = max(1 << 20, int(0.7 * vmem_limit) - weight_bytes)
    m_budget = (budget // per_pixel) // 128 * 128
    m_target = (target_block_bytes // max(1, C_in * itemsize_x)) // 128 * 128
    m = max(128, min(m_target, m_budget))
    # No point exceeding the 128-padded pixel extent.
    m = min(m, pl.cdiv(M, 128) * 128)
    return int(m)


def resnet_block_pallas(x_nchw, w1, b1, w2, alpha=0.1):
    """
    x_nchw : (N, C_in, H, W)
    w1     : (hid, C_in)   -- Conv2d(in, hid, k=1) weight squeezed (PyTorch (out, in))
    b1     : (hid,)
    w2     : (C_out, hid)  -- Conv2d(hid, out, k=1, bias=False) weight squeezed
    """
    N, C_in, H, W = x_nchw.shape
    hid = w1.shape[0]
    C_out = w2.shape[0]
    assert C_out == C_in, "residual connection requires in_channels == out_channels"

    M = H * W
    x3 = x_nchw.reshape(N, C_in, M)  # collapse trailing contiguous dims: free
    b1_col = b1.reshape(hid, 1)

    itemsize_x = jnp.dtype(x_nchw.dtype).itemsize
    itemsize_w = jnp.dtype(w1.dtype).itemsize
    vmem_limit = _vmem_limit_bytes()
    m_tile = _choose_m_tile(M, C_in, C_out, hid, itemsize_x, itemsize_w, vmem_limit)

    # Pixel-tile axis first so megacore (v7x) sharding stays balanced for small N.
    grid = (pl.cdiv(M, m_tile), N)

    flops = 2 * N * M * (C_in * hid + hid * C_out) + 3 * N * M * C_out
    bytes_accessed = (2 * N * C_in * M) * itemsize_x + (
        w1.size + w2.size + b1.size) * itemsize_w

    out3 = pl.pallas_call(
        functools.partial(_resnet_block_kernel, alpha=float(alpha)),
        out_shape=jax.ShapeDtypeStruct((N, C_out, M), x_nchw.dtype),
        grid_spec=pltpu.PrefetchScalarGridSpec(
            num_scalar_prefetch=0,
            grid=grid,
            in_specs=[
                # x pixel tile: edge blocks are masked by Pallas (no host pad/slice).
                pl.BlockSpec((None, C_in, m_tile), lambda j, n: (n, 0, j)),
                # Loop-invariant weights/bias: fetched once, single-buffered.
                pl.BlockSpec((hid, C_in), lambda j, n: (0, 0),
                             pipeline_mode=pl.Buffered(1)),
                pl.BlockSpec((hid, 1), lambda j, n: (0, 0),
                             pipeline_mode=pl.Buffered(1)),
                pl.BlockSpec((C_out, hid), lambda j, n: (0, 0),
                             pipeline_mode=pl.Buffered(1)),
            ],
            out_specs=pl.BlockSpec((None, C_out, m_tile), lambda j, n: (n, 0, j)),
        ),
        compiler_params=pltpu.CompilerParams(
            dimension_semantics=("parallel", "parallel"),
            vmem_limit_bytes=vmem_limit,
        ),
        cost_estimate=pl.CostEstimate(
            flops=int(flops), transcendentals=0, bytes_accessed=int(bytes_accessed)),
    )(x3, w1, b1_col, w2)

    return out3.reshape(N, C_out, H, W)


def resnet_block_ref(x_nchw, w1, b1, w2, alpha=0.1):
    """Pure-JAX reference matching the PyTorch forward."""
    h = jnp.einsum("nchw,oc->nohw", x_nchw, w1) + b1[None, :, None, None]
    h = jnp.maximum(h, 0.0)
    y = jnp.einsum("nchw,oc->nohw", h, w2)
    return alpha * y + x_nchw


if __name__ == "__main__":
    key = jax.random.PRNGKey(0)
    k_x, k_w1, k_b1, k_w2 = jax.random.split(key, 4)

    N, C, Hs, Ws = 2, 4, 16, 16
    hid_dim = 32
    alpha = 0.1

    x = jax.random.normal(k_x, (N, C, Hs, Ws), dtype=jnp.float32)
    # Conv2d(in=C, out=hid, k=1) weight (hid, C, 1, 1) squeezed -> (hid, C)
    w1 = jax.random.normal(k_w1, (hid_dim, C), dtype=jnp.float32) * 0.1
    b1 = jax.random.normal(k_b1, (hid_dim,), dtype=jnp.float32) * 0.1
    # Conv2d(hid, out=C, k=1, bias=False) weight -> (C, hid)
    w2 = jax.random.normal(k_w2, (C, hid_dim), dtype=jnp.float32) * 0.1

    out = resnet_block_pallas(x, w1, b1, w2, alpha=alpha)
    out = jax.block_until_ready(out)

    ref = resnet_block_ref(x, w1, b1, w2, alpha=alpha)
    assert out.shape == (N, C, Hs, Ws)
    assert jnp.allclose(out, ref, atol=1e-5, rtol=1e-5), "mismatch vs reference"

    print("KERNEL_OK")
</pallas_src>

<mosaic_0001>
module attributes {stable_mosaic.version = 11 : i64} {
  func.func @_resnet_block_kernel(%arg0: i32, %arg1: i32, %arg2: memref<1x4x256xf32, #tpu.memory_space<vmem>>, %arg3: memref<32x4xf32, #tpu.memory_space<vmem>>, %arg4: memref<32x1xf32, #tpu.memory_space<vmem>>, %arg5: memref<4x32xf32, #tpu.memory_space<vmem>>, %arg6: memref<1x4x256xf32, #tpu.memory_space<vmem>>) attributes {dimension_semantics = [#tpu.dimension_semantics<parallel>, #tpu.dimension_semantics<parallel>], iteration_bounds = array<i64: 1, 2>, scalar_prefetch = 0 : i64, scratch_operands = 0 : i64, tpu.core_type = #tpu.core_type<tc>, window_params = [{transform_indices = @transform_0, window_bounds = array<i64: 1, 4, 256>}, {pipeline_mode = #tpu.pipeline_mode<synchronous>, transform_indices = @transform_1, window_bounds = array<i64: 32, 4>}, {pipeline_mode = #tpu.pipeline_mode<synchronous>, transform_indices = @transform_2, window_bounds = array<i64: 32, 1>}, {pipeline_mode = #tpu.pipeline_mode<synchronous>, transform_indices = @transform_3, window_bounds = array<i64: 4, 32>}, {transform_indices = @transform_4, window_bounds = array<i64: 1, 4, 256>}]} {
    %c0 = arith.constant 0 : index
    %c0_0 = arith.constant 0 : index
    %c0_1 = arith.constant 0 : index
    %0 = vector.load %arg2[%c0, %c0_0, %c0_1] : memref<1x4x256xf32, #tpu.memory_space<vmem>>, vector<1x4x256xf32>
    %1 = vector.shape_cast %0 : vector<1x4x256xf32> to vector<4x256xf32>
    %c0_2 = arith.constant 0 : index
    %c0_3 = arith.constant 0 : index
    %2 = vector.load %arg3[%c0_2, %c0_3] : memref<32x4xf32, #tpu.memory_space<vmem>>, vector<32x4xf32>
    %cst = arith.constant dense<0.000000e+00> : vector<32x256xf32>
    %3 = tpu.matmul %2, %1, %cst {dimension_numbers = #tpu.dot_dimension_numbers<[1], [0], [0], [1], [0, 0, 1, 1], [], []>} : vector<32x4xf32>, vector<4x256xf32>, vector<32x256xf32> -> vector<32x256xf32>
    %c0_4 = arith.constant 0 : index
    %c0_5 = arith.constant 0 : index
    %4 = vector.load %arg4[%c0_4, %c0_5] : memref<32x1xf32, #tpu.memory_space<vmem>>, vector<32x1xf32>
    %5 = vector.broadcast %4 : vector<32x1xf32> to vector<32x256xf32>
    %6 = arith.addf %3, %5 : vector<32x256xf32>
    %cst_6 = arith.constant 0.000000e+00 : f32
    %7 = vector.broadcast %cst_6 : f32 to vector<32x256xf32>
    %8 = arith.maximumf %6, %7 : vector<32x256xf32>
    %c0_7 = arith.constant 0 : index
    %c0_8 = arith.constant 0 : index
    %9 = vector.load %arg5[%c0_7, %c0_8] : memref<4x32xf32, #tpu.memory_space<vmem>>, vector<4x32xf32>
    %cst_9 = arith.constant dense<0.000000e+00> : vector<4x256xf32>
    %10 = tpu.matmul %9, %8, %cst_9 {dimension_numbers = #tpu.dot_dimension_numbers<[1], [0], [0], [1], [0, 0, 1, 1], [], []>} : vector<4x32xf32>, vector<32x256xf32>, vector<4x256xf32> -> vector<4x256xf32>
    %cst_10 = arith.constant 1.000000e-01 : f32
    %11 = vector.broadcast %cst_10 : f32 to vector<4x256xf32>
    %12 = arith.mulf %11, %10 : vector<4x256xf32>
    %13 = arith.addf %12, %1 : vector<4x256xf32>
    %c0_11 = arith.constant 0 : index
    %c0_12 = arith.constant 0 : index
    %c0_13 = arith.constant 0 : index
    %14 = vector.load %arg6[%c0_11, %c0_12, %c0_13] : memref<1x4x256xf32, #tpu.memory_space<vmem>>, vector<1x4x256xf32>
    %15 = vector.shape_cast %14 : vector<1x4x256xf32> to vector<4x256xf32>
    %16 = vector.shape_cast %13 : vector<4x256xf32> to vector<1x4x256xf32>
    tpu.vector_store %arg6[%c0_11, %c0_12, %c0_13], %16 {strides = array<i32>} : memref<1x4x256xf32, #tpu.memory_space<vmem>>, vector<1x4x256xf32>,
    return
  }
  func.func @transform_0(%arg0: i32, %arg1: i32) -> (i32, i32, i32) {
    %c0_i32 = arith.constant 0 : i32
    %c0_i32_0 = arith.constant 0 : i32
    return %arg1, %c0_i32, %arg0 : i32, i32, i32
  }
  func.func @transform_1(%arg0: i32, %arg1: i32) -> (i32, i32) {
    %c0_i32 = arith.constant 0 : i32
    %c0_i32_0 = arith.constant 0 : i32
    %c0_i32_1 = arith.constant 0 : i32
    return %c0_i32, %c0_i32_0 : i32, i32
  }
  func.func @transform_2(%arg0: i32, %arg1: i32) -> (i32, i32) {
    %c0_i32 = arith.constant 0 : i32
    %c0_i32_0 = arith.constant 0 : i32
    %c0_i32_1 = arith.constant 0 : i32
    return %c0_i32, %c0_i32_0 : i32, i32
  }
  func.func @transform_3(%arg0: i32, %arg1: i32) -> (i32, i32) {
    %c0_i32 = arith.constant 0 : i32
    %c0_i32_0 = arith.constant 0 : i32
    %c0_i32_1 = arith.constant 0 : i32
    return %c0_i32, %c0_i32_0 : i32, i32
  }
  func.func @transform_4(%arg0: i32, %arg1: i32) -> (i32, i32, i32) {
    %c0_i32 = arith.constant 0 : i32
    %c0_i32_0 = arith.constant 0 : i32
    return %arg1, %c0_i32, %arg0 : i32, i32, i32
  }
}

</mosaic_0001>

<llo_original>
// kernel: tpu_custom_call.1
$region0: #{tpu_custom_call.1}
  #allocation0 [shape = 'u32[]', space=smem, size = 0x4, offset = 0x4, fixed_abs, tag = 'smem constant byte address 0x4 - core index']
  #allocation1 [shape = 'u32[72,128]{1,0:T(1,128)}', space=vmem, size = 0x9000, scoped, tag = 'internal scratch']
  %s0 = inlined_call_operand.vmem [shape: f32[2,4,256], index: 0, kind: input, shape index: {}]
  %s1 = inlined_call_operand.vmem [shape: f32[32,4], index: 1, kind: input, shape index: {}]
  %s2 = inlined_call_operand.vmem [shape: f32[32,1], index: 2, kind: input, shape index: {}]
  %s3 = inlined_call_operand.vmem [shape: f32[4,32], index: 3, kind: input, shape index: {}]
  %s4 = inlined_call_operand.hbm [shape: f32[2,4,256], index: 4, kind: output, shape index: {}]
  %s5 = sld [smem:[#allocation0]]
  $region49: #{tpu_custom_call.1} parent=0
    _
  %s7 = ssub.s32 1, %s5
  %s8 = scalar_select 0, %s7, %s5
  $region1: #{tpu_custom_call.1} parent=0
    #allocation2 [shape = 'u8[8192]{0}', space=vmem, size = 0x2000, scoped, tag = 'output window, operand 0']
    #allocation3 [shape = 's32[2]{0}', space=sflag, size = 0x8, scoped, tag = 'scoped memory for tpu_custom_call.1']
    %9 = vsyncpa [#allocation3], 0
    %s10 = scalar_lea.sflag [#allocation3], 1
    %11 = vsyncpa %s10, 0
    loop: start=0, step=1, limit=4
    $region2: #{tpu_custom_call.1} parent=1 // loop_pre_header
      _
    $region3: #{tpu_custom_call.1} parent=1 // loop_header
      %s13 = sphi 0, %s17
      %p14 = scmp.ge.s32.totalorder %s13, 4
      %s20 = sphi 0, %s32
      %s21 = sphi 0, %s28
      %s22 = sphi 0, %s20
      %s23 = sphi 0, %s21
      %s24 = sphi 0, %s22
      %s25 = sphi 0, %s23
      %s37 = sphi 0, %s39
      %s40 = sphi 0, %s37
      %s41 = sphi 0, %s40
      %s57 = sphi 0, %s41
      %s61 = sphi 0, %s61
      %s63 = sphi 0, %s61
      %s64 = sphi 0, %s63
      %s78 = sphi 0, %s64
      %s82 = sphi 0, %s82
      %s84 = sphi 0, %s82
      %s85 = sphi 0, %s84
      %s99 = sphi 0, %s85
      %s103 = sphi 0, %s103
      %s105 = sphi 0, %s103
      %s106 = sphi 0, %s105
      %s120 = sphi 0, %s106
      %s128 = sphi 0, %s130
      %s131 = sphi 0, %s128
      %s132 = sphi 0, %s131
      %s148 = sphi 0, %s132
    $region4: #{tpu_custom_call.1} parent=1 // loop_header_branch
      %16 = sbr.rel (%p14) target = $region8
    $region5: #{tpu_custom_call.1} parent=1 // loop_body
      %s18 = ssub.s32 %s13, 1
      %s19 = ssub.s32 %s13, 2
      %s26 = sadd.s32 1, %s21
      %p27 = scmp.ge.s32.totalorder %s26, 2
      %s28 = scalar_select %p27, 0, %s26
      %s29 = sadd.s32 1, %s20
      %s30 = scalar_select %p27, %s29, %s20
      %p31 = scmp.ge.s32.totalorder %s30, 1
      %s32 = scalar_select %p31, 0, %s30
      %s33 = ssub.s32 %s21, %s28
      %s34 = ssub.s32 %s20, %s32
      %s35 = sor.u32 %s33, %s34
      %p36 = scmp.eq.s32.totalorder %s35, 0
      %s38 = sadd.s32 %s37, 1
      %s39 = scalar_select %p36, %s37, %s38
      %p42 = pneg %p36
      %p43 = scmp.eq.s32.totalorder %s13, 1
      %p44 = por %p42, %p43
      %p45 = scmp.ne.s32.totalorder %s37, %s40
      %p46 = scmp.eq.s32.totalorder %s13, 0
      %p47 = por %p45, %p46
      %p48 = scmp.ne.s32.totalorder %s37, %s40
      %p49 = scmp.eq.s32.totalorder %s18, 1
      %p50 = por %p48, %p49
      %p51 = scmp.ne.s32.totalorder %s40, %s41
      %p52 = scmp.eq.s32.totalorder %s18, 0
      %p53 = por %p51, %p52
      %p54 = scmp.ne.s32.totalorder %s40, %s41
      %p55 = scmp.eq.s32.totalorder %s19, 1
      %p56 = por %p54, %p55
      %p58 = scmp.ne.s32.totalorder %s41, %s57
      %p59 = scmp.eq.s32.totalorder %s19, 0
      %p60 = por %p58, %p59
      %s62 = sadd.s32 %s61, 1
      %p65 = scmp.eq.s32.totalorder %s13, 1
      %p66 = scmp.ne.s32.totalorder %s61, %s63
      %p67 = scmp.eq.s32.totalorder %s13, 0
      %p68 = por %p66, %p67
      %p69 = scmp.ne.s32.totalorder %s61, %s63
      %p70 = scmp.eq.s32.totalorder %s18, 1
      %p71 = por %p69, %p70
      %p72 = scmp.ne.s32.totalorder %s63, %s64
      %p73 = scmp.eq.s32.totalorder %s18, 0
      %p74 = por %p72, %p73
      %p75 = scmp.ne.s32.totalorder %s63, %s64
      %p76 = scmp.eq.s32.totalorder %s19, 1
      %p77 = por %p75, %p76
      %p79 = scmp.ne.s32.totalorder %s64, %s78
      %p80 = scmp.eq.s32.totalorder %s19, 0
      %p81 = por %p79, %p80
      %s83 = sadd.s32 %s82, 1
      %p86 = scmp.eq.s32.totalorder %s13, 1
      %p87 = scmp.ne.s32.totalorder %s82, %s84
      %p88 = scmp.eq.s32.totalorder %s13, 0
      %p89 = por %p87, %p88
      %p90 = scmp.ne.s32.totalorder %s82, %s84
      %p91 = scmp.eq.s32.totalorder %s18, 1
      %p92 = por %p90, %p91
      %p93 = scmp.ne.s32.totalorder %s84, %s85
      %p94 = scmp.eq.s32.totalorder %s18, 0
      %p95 = por %p93, %p94
      %p96 = scmp.ne.s32.totalorder %s84, %s85
      %p97 = scmp.eq.s32.totalorder %s19, 1
      %p98 = por %p96, %p97
      %p100 = scmp.ne.s32.totalorder %s85, %s99
      %p101 = scmp.eq.s32.totalorder %s19, 0
      %p102 = por %p100, %p101
      %s104 = sadd.s32 %s103, 1
      %p107 = scmp.eq.s32.totalorder %s13, 1
      %p108 = scmp.ne.s32.totalorder %s103, %s105
      %p109 = scmp.eq.s32.totalorder %s13, 0
      %p110 = por %p108, %p109
      %p111 = scmp.ne.s32.totalorder %s103, %s105
      %p112 = scmp.eq.s32.totalorder %s18, 1
      %p113 = por %p111, %p112
      %p114 = scmp.ne.s32.totalorder %s105, %s106
      %p115 = scmp.eq.s32.totalorder %s18, 0
      %p116 = por %p114, %p115
      %p117 = scmp.ne.s32.totalorder %s105, %s106
      %p118 = scmp.eq.s32.totalorder %s19, 1
      %p119 = por %p117, %p118
      %p121 = scmp.ne.s32.totalorder %s106, %s120
      %p122 = scmp.eq.s32.totalorder %s19, 0
      %p123 = por %p121, %p122
      %s124 = ssub.s32 %s21, %s28
      %s125 = ssub.s32 %s20, %s32
      %s126 = sor.u32 %s124, %s125
      %p127 = scmp.eq.s32.totalorder %s126, 0
      %s129 = sadd.s32 %s128, 1
      %s130 = scalar_select %p127, %s128, %s129
      %p133 = pneg %p127
      %p134 = scmp.eq.s32.totalorder %s13, 1
      %p135 = por %p133, %p134
      %p136 = scmp.ne.s32.totalorder %s128, %s131
      %p137 = scmp.eq.s32.totalorder %s13, 0
      %p138 = por %p136, %p137
      %p139 = scmp.ne.s32.totalorder %s128, %s131
      %p140 = scmp.eq.s32.totalorder %s18, 1
      %p141 = por %p139, %p140
      %p142 = scmp.ne.s32.totalorder %s131, %s132
      %p143 = scmp.eq.s32.totalorder %s18, 0
      %p144 = por %p142, %p143
      %p145 = scmp.ne.s32.totalorder %s131, %s132
      %p146 = scmp.eq.s32.totalorder %s19, 1
      %p147 = por %p145, %p146
      %p149 = scmp.ne.s32.totalorder %s132, %s148
      %p150 = scmp.eq.s32.totalorder %s19, 0
      %p151 = por %p149, %p150
      %p152 = scmp.le.s32.totalorder 1, %s13
      %p153 = scmp.lt.s32.totalorder %s13, 3
      %p154 = pnand %p152, %p153
      %p155 = pneg %p154
      // Predicated region
      $region9: #{tpu_custom_call.1} parent=5 // pred_check
        _
      $region10: #{tpu_custom_call.1} parent=5 // pred_check_branch
        %157 = sbr.rel (%p154) target = $region12
      $region11: #{tpu_custom_call.1} parent=5 // pred_region
        %s158 = ssub.s32 %s13, 1
        // Predicated region
        $region13: #{tpu_custom_call.1} parent=11 // pred_check
          %p159 = pneg %p74
        $region14: #{tpu_custom_call.1} parent=11 // pred_check_branch
          %161 = sbr.rel (%p159) target = $region16
        $region15: #{tpu_custom_call.1} parent=11 // pred_region
          _
        $region16: #{tpu_custom_call.1} parent=11 // pred_fallthru
          _
        // Predicated region
        $region17: #{tpu_custom_call.1} parent=11 // pred_check
          %p162 = pneg %p95
        $region18: #{tpu_custom_call.1} parent=11 // pred_check_branch
          %164 = sbr.rel (%p162) target = $region20
        $region19: #{tpu_custom_call.1} parent=11 // pred_region
          _
        $region20: #{tpu_custom_call.1} parent=11 // pred_fallthru
          _
        // Predicated region
        $region21: #{tpu_custom_call.1} parent=11 // pred_check
          %p165 = pneg %p116
        $region22: #{tpu_custom_call.1} parent=11 // pred_check_branch
          %167 = sbr.rel (%p165) target = $region24
        $region23: #{tpu_custom_call.1} parent=11 // pred_region
          _
        $region24: #{tpu_custom_call.1} parent=11 // pred_fallthru
          _
      $region12: #{tpu_custom_call.1} parent=5 // pred_fallthru
        _
      %p168 = scmp.lt.s32.totalorder %s13, 2
      // Predicated region
      $region25: #{tpu_custom_call.1} parent=5 // pred_check
        %p169 = pneg %p168
      $region26: #{tpu_custom_call.1} parent=5 // pred_check_branch
        %171 = sbr.rel (%p169) target = $region28
      $region27: #{tpu_custom_call.1} parent=5 // pred_region
        // Predicated region
        $region29: #{tpu_custom_call.1} parent=27 // pred_check
          %p172 = pneg %p47
        $region30: #{tpu_custom_call.1} parent=27 // pred_check_branch
          %174 = sbr.rel (%p172) target = $region32
        $region31: #{tpu_custom_call.1} parent=27 // pred_region
          %s175 = smul.u32 2, %s20
          %p176 = scmp.lt.s32.totalorder %s21, 1
          %s177 = scalar_select %p176, %s21, 1
          %p178 = scmp.lt.s32.totalorder %s175, 1
          %s179 = scalar_select %p178, %s175, 1
          %s180 = smul.addr %s177, 2
          %s181 = sadd.s32 %s179, %s180
          %s182 = smul.addr %s181, 4
          %s183 = scalar_lea.vmem %s0, %s182
          %s184 = smul.u32 2, %s20
        $region32: #{tpu_custom_call.1} parent=27 // pred_fallthru
          _
      $region28: #{tpu_custom_call.1} parent=5 // pred_fallthru
        _
      %p185 = scmp.le.s32.totalorder 1, %s13
      %p186 = scmp.lt.s32.totalorder %s13, 3
      %p187 = pnand %p185, %p186
      %p188 = pneg %p187
      // Predicated region
      $region33: #{tpu_custom_call.1} parent=5 // pred_check
        _
      $region34: #{tpu_custom_call.1} parent=5 // pred_check_branch
        %190 = sbr.rel (%p187) target = $region36
      $region35: #{tpu_custom_call.1} parent=5 // pred_region
        %s191 = ssub.s32 %s13, 1
        %s192 = smul.u32 2, %s22
        %p193 = scmp.lt.s32.totalorder %s23, 1
        %s194 = scalar_select %p193, %s23, 1
        %p195 = scmp.lt.s32.totalorder %s192, 1
        %s196 = scalar_select %p195, %s192, 1
        %s197 = smul.addr %s194, 2
        %s198 = sadd.s32 %s196, %s197
        %s199 = smul.addr %s198, 4
        %s200 = scalar_lea.vmem %s0, %s199
        %p201 = pneg %p53
        %p202 = pneg %p50
        %p203 = pneg %p74
        %p204 = pneg %p71
        %p205 = pneg %p95
        %p206 = pneg %p92
        %p207 = pneg %p116
        %p208 = pneg %p113
        %p209 = pneg %p144
        %p210 = pneg %p141
        %s211 = sand.u32 %s131, 1
        %s212 = scalar_lea.sflag [#allocation3], %s211
        %s213 = sand.u32 %s131, 1
        %s214 = smul.addr %s213, 8
        %s215 = scalar_lea.vmem [#allocation2], %s214
        %s216 = smul.u32 2, %s22
        %p217 = scmp.lt.s32.totalorder %s23, 1
        %s218 = scalar_select %p217, %s23, 1
        %p219 = scmp.lt.s32.totalorder %s216, 1
        %s220 = scalar_select %p219, %s216, 1
        %s221 = smul.addr %s218, 2
        %s222 = sadd.s32 %s220, %s221
        %s223 = smul.addr %s222, 4
        %s224 = scalar_lea.vmem %s0, %s223
        %s225 = smul.u32 2, %s22
        %s226 = smul.u32 2, %s22
        %v227 = vld [vmem:[%s224] sm:$0xff]
        %v228 = vld [vmem:[%s1] sm:$0xff]
        %v229 = vld [vmem:[%s1 + $0x8] sm:$0xff]
        %v230 = vld [vmem:[%s1 + $0x10] sm:$0xff]
        %v231 = vld [vmem:[%s1 + $0x18] sm:$0xff]
        %v232 = vld [vmem:[%s2] sm:$0xff]
        %v233 = vld [vmem:[%s2 + $0x8] sm:$0xff]
        %v234 = vld [vmem:[%s2 + $0x10] sm:$0xff]
        %v235 = vld [vmem:[%s2 + $0x18] sm:$0xff]
        %237 = vset.pattern.permute.xlu0 0
        %238 = vperm.xlu0 %237, %v232
        %v239 = vpop.permute.xlu0 %238
        %242 = vset.pattern.permute.xlu0 0
        %243 = vperm.xlu0 %242, %v233
        %v244 = vpop.permute.xlu0 %243
        %247 = vset.pattern.permute.xlu0 0
        %248 = vperm.xlu0 %247, %v234
        %v249 = vpop.permute.xlu0 %248
        %252 = vset.pattern.permute.xlu0 0
        %253 = vperm.xlu0 %252, %v235
        %v254 = vpop.permute.xlu0 %253
        %257 = vst [vmem:[#allocation1] ss:$2 sm:$0xff] %v227
        %v258 = vld.sshfl [vmem:[#allocation1] sm:$0xff pattern:$0x75316420]
        %v259 = vld.sshfl [vmem:[#allocation1 + $0x8] sm:$0xff pattern:$0x75316420]
        %vm260 = vcmask 31744
        %v262 = vsel %vm260, %v228, 0
        %v265 = vsel %vm260, %v229, 0
        %v268 = vsel %vm260, %v230, 0
        %v271 = vsel %vm260, %v231, 0
        %vm273 = vcmask 1043456
        %v274 = vsel %vm273, %v258, 0
        %v276 = vsel %vm273, %v259, 0
        %278 = vmatpush.msra.mxu0 0.0
        %279 = vmatpush.msra.mxu0 0.0
        %280 = vmatpush.msra.mxu0 0.0
        %281 = vmatpush.msra.mxu0 0.0
        %282 = vmatpush.msra.mxu0 0.0
        %283 = vmatpush.msra.mxu0 0.0
        %284 = vmatpush.msra.mxu0 0.0
        %285 = vmatpush.msra.mxu0 0.0
        %286 = vmatpush.msra.mxu0 0.0
        %287 = vmatpush.msra.mxu0 0.0
        %288 = vmatpush.msra.mxu0 0.0
        %289 = vmatpush.msra.mxu0 0.0
        %290 = vmatpush.msra.mxu0 0.0
        %291 = vmatpush.msra.mxu0 0.0
        %292 = vmatpush.msra.mxu0 0.0
        %293 = vmatpush.msra.mxu0 %v274
        %294 = vmatmul.f32.gmra.mxu0 %v262
        %v295 = vpop.f32.mrf.mxu0
        %v296 = vadd.f32 %v239, %v295
        %297 = vmatmul.f32.gmra.mxu0 %v265
        %v298 = vpop.f32.mrf.mxu0
        %v299 = vadd.f32 %v244, %v298
        %300 = vmatmul.f32.gmra.mxu0 %v268
        %v301 = vpop.f32.mrf.mxu0
        %v302 = vadd.f32 %v249, %v301
        %303 = vmatmul.f32.gmra.mxu0 %v271
        %v304 = vpop.f32.mrf.mxu0
        %v305 = vadd.f32 %v254, %v304
        %306 = vdwg.mxu0
        %307 = vmatpush.msra.mxu0 0.0
        %308 = vmatpush.msra.mxu0 0.0
        %309 = vmatpush.msra.mxu0 0.0
        %310 = vmatpush.msra.mxu0 0.0
        %311 = vmatpush.msra.mxu0 0.0
        %312 = vmatpush.msra.mxu0 0.0
        %313 = vmatpush.msra.mxu0 0.0
        %314 = vmatpush.msra.mxu0 0.0
        %315 = vmatpush.msra.mxu0 0.0
        %316 = vmatpush.msra.mxu0 0.0
        %317 = vmatpush.msra.mxu0 0.0
        %318 = vmatpush.msra.mxu0 0.0
        %319 = vmatpush.msra.mxu0 0.0
        %320 = vmatpush.msra.mxu0 0.0
        %321 = vmatpush.msra.mxu0 0.0
        %322 = vmatpush.msra.mxu0 %v276
        %323 = vmatmul.f32.gmra.mxu0 %v262
        %v324 = vpop.f32.mrf.mxu0
        %v325 = vadd.f32 %v239, %v324
        %326 = vmatmul.f32.gmra.mxu0 %v265
        %v327 = vpop.f32.mrf.mxu0
        %v328 = vadd.f32 %v244, %v327
        %329 = vmatmul.f32.gmra.mxu0 %v268
        %v330 = vpop.f32.mrf.mxu0
        %v331 = vadd.f32 %v249, %v330
        %332 = vmatmul.f32.gmra.mxu0 %v271
        %v333 = vpop.f32.mrf.mxu0
        %v334 = vadd.f32 %v254, %v333
        %335 = vdwg.mxu0
        %v336 = vmax.f32 %v296, 0.0
        %v337 = vmax.f32 %v325, 0.0
        %v338 = vmax.f32 %v299, 0.0
        %v339 = vmax.f32 %v328, 0.0
        %v340 = vmax.f32 %v302, 0.0
        %v341 = vmax.f32 %v331, 0.0
        %v342 = vmax.f32 %v305, 0.0
        %v343 = vmax.f32 %v334, 0.0
        %v344 = vld [vmem:[%s3] sm:$0xf]
        %vm345 = vcmask 261120
        %v347 = vsel %vm345, %v344, 0
        %349 = vmatpush.msra.mxu0 0.0
        %350 = vmatpush.msra.mxu0 0.0
        %351 = vmatpush.msra.mxu0 0.0
        %352 = vmatpush.msra.mxu0 0.0
        %353 = vmatpush.msra.mxu0 0.0
        %354 = vmatpush.msra.mxu0 0.0
        %355 = vmatpush.msra.mxu0 0.0
        %356 = vmatpush.msra.mxu0 0.0
        %357 = vmatpush.msra.mxu0 0.0
        %358 = vmatpush.msra.mxu0 0.0
        %359 = vmatpush.msra.mxu0 0.0
        %360 = vmatpush.msra.mxu0 0.0
        %361 = vmatpush.msra.mxu0 %v342
        %362 = vmatpush.msra.mxu0 %v340
        %363 = vmatpush.msra.mxu0 %v338
        %364 = vmatpush.msra.mxu0 %v336
        %365 = vmatmul.f32.gmra.mxu0 %v347
        %v366 = vpop.f32.mrf.mxu0
        %v367 = vadd.f32 0.0, %v366
        %368 = vdwg.mxu0
        %369 = vmatpush.msra.mxu0 0.0
        %370 = vmatpush.msra.mxu0 0.0
        %371 = vmatpush.msra.mxu0 0.0
        %372 = vmatpush.msra.mxu0 0.0
        %373 = vmatpush.msra.mxu0 0.0
        %374 = vmatpush.msra.mxu0 0.0
        %375 = vmatpush.msra.mxu0 0.0
        %376 = vmatpush.msra.mxu0 0.0
        %377 = vmatpush.msra.mxu0 0.0
        %378 = vmatpush.msra.mxu0 0.0
        %379 = vmatpush.msra.mxu0 0.0
        %380 = vmatpush.msra.mxu0 0.0
        %381 = vmatpush.msra.mxu0 %v343
        %382 = vmatpush.msra.mxu0 %v341
        %383 = vmatpush.msra.mxu0 %v339
        %384 = vmatpush.msra.mxu0 %v337
        %385 = vmatmul.f32.gmra.mxu0 %v347
        %v386 = vpop.f32.mrf.mxu0
        %v387 = vadd.f32 0.0, %v386
        %388 = vdwg.mxu0
        %v389 = vmul.f32 %v367, 0.1
        %v390 = vmul.f32 %v387, 0.1
        %391 = vst [vmem:[#allocation1] ss:$2 sm:$0xff] %v227
        %v392 = vld.sshfl [vmem:[#allocation1] sm:$0xff pattern:$0x75316420]
        %v393 = vld.sshfl [vmem:[#allocation1 + $0x8] sm:$0xff pattern:$0x75316420]
        %v396 = vadd.f32 %v389, %v392
        %v397 = vadd.f32 %v390, %v393
        %v400 = vrot.slane %v397, 4
        %v401 = vsel %vm273, %v396, %v400
        %403 = vst [vmem:[%s215] sm:$0xff] %v401
        %s404 = sand.u32 %s131, 1
        %s405 = scalar_lea.sflag [#allocation3], %s404
        %s406 = sand.u32 %s131, 1
        %s407 = smul.addr %s406, 8
        %s408 = scalar_lea.vmem [#allocation2], %s407
        // Predicated region
        $region37: #{tpu_custom_call.1} parent=35 // pred_check
          %p409 = pneg %p141
        $region38: #{tpu_custom_call.1} parent=35 // pred_check_branch
          %411 = sbr.rel (%p409) target = $region40
        $region39: #{tpu_custom_call.1} parent=35 // pred_region
          %s412 = smul.u32 2, %s22
          %414 = vsyncadd %s405, 0
          %s415 = smul.addr %s23, 2
          %s416 = sadd.s32 %s412, %s415
          %s417 = smul.addr %s416, 4
          %s418 = scalar_lea.hbm %s4, %s417
          %s420 = sshll.u32 %s408, 4
          %s421 = int_to_ptr.vmem [resolvable:$true] %s420
          %s422 = sshll.u32 %s418, 4
          %s423 = int_to_ptr.hbm [resolvable:$true] %s422
          %425 = dma.vmem_to_hbm [thread:$0]  %s421, 128, %s423, %s405
        $region40: #{tpu_custom_call.1} parent=35 // pred_fallthru
          _
      $region36: #{tpu_custom_call.1} parent=5 // pred_fallthru
        _
      %p426 = scmp.le.s32.totalorder 2, %s13
      // Predicated region
      $region41: #{tpu_custom_call.1} parent=5 // pred_check
        %p427 = pneg %p426
      $region42: #{tpu_custom_call.1} parent=5 // pred_check_branch
        %429 = sbr.rel (%p427) target = $region44
      $region43: #{tpu_custom_call.1} parent=5 // pred_region
        %s430 = ssub.s32 %s13, 2
        // Predicated region
        $region45: #{tpu_custom_call.1} parent=43 // pred_check
          %p431 = pneg %p147
        $region46: #{tpu_custom_call.1} parent=43 // pred_check_branch
          %433 = sbr.rel (%p431) target = $region48
        $region47: #{tpu_custom_call.1} parent=43 // pred_region
          %s434 = sand.u32 %s132, 1
          %s435 = scalar_lea.sflag [#allocation3], %s434
          %s436 = sand.u32 %s132, 1
          %s437 = smul.addr %s436, 8
          %s438 = scalar_lea.vmem [#allocation2], %s437
          %440 = dma.done %s435, 128
        $region48: #{tpu_custom_call.1} parent=43 // pred_fallthru
          _
      $region44: #{tpu_custom_call.1} parent=5 // pred_fallthru
        _
    $region6: #{tpu_custom_call.1} parent=1 // loop_footer
      %s17 = sadd.s32 1, %s13
    $region7: #{tpu_custom_call.1} parent=1 // loop_footer_branch
      %12 = sbr.rel target = $region3
    $region8: #{tpu_custom_call.1} parent=1 // loop_exit
      _
    %441 = vsyncpa [#allocation3], 1
    %s442 = scalar_lea.sflag [#allocation3], 1
    %443 = vsyncpa %s442, 1

</llo_original>
